<compile_context>
chip_gen: v7x
topology: tpu7x:2x2x1
jax: 0.10.0
libtpu: 0.0.40
codegen_flags: <defaults>
</compile_context>

<pallas_src>
import functools

import jax
import jax.numpy as jnp
from jax import lax
from jax.experimental import pallas as pl
from jax.experimental.pallas import tpu as pltpu

LANES = 128  # lane width (last dim of the streamed slab)


def _chip_config():
    """Returns (max_block_rows, partials_cap, use_core_parallel)."""
    kind = ""
    try:
        kind = jax.devices()[0].device_kind.lower()
    except Exception:  # pragma: no cover - detection failure -> conservative
        pass
    if "v7" in kind:
        # 2 TCs; 8192x128 f32 blocks => 16 MiB double-buffered, fits the
        # 32 MiB default scoped VMEM limit.
        return 8192, 2, True
    if "v6" in kind:
        # Single TC, 32 MiB default scoped VMEM: big blocks, no partial split.
        return 8192, 1, False
    # v5e and unknown chips: stay under the 16 MiB default scoped VMEM limit.
    return 4096, 1, False


def _elementwise_loss(x, y, beta):
    diff = jnp.abs(x.astype(jnp.float32) - y.astype(jnp.float32))
    if beta > 0:
        return jnp.where(diff < beta, diff * diff * (0.5 / beta), diff - 0.5 * beta)
    return diff


def _smooth_l1_kernel(x_ref, y_ref, o_ref, acc_ref, *, beta, rows, block_rows,
                      blocks_per_partial, need_mask):
    c = pl.program_id(0)   # partial / core index  (parallel / core-parallel)
    j = pl.program_id(1)   # reduction step        (arbitrary)

    @pl.when(j == 0)
    def _():
        acc_ref[...] = jnp.zeros_like(acc_ref)

    x = x_ref[...].astype(jnp.float32)
    y = y_ref[...].astype(jnp.float32)
    diff = jnp.abs(x - y)
    if beta > 0:
        # Constants folded on the host: no per-element divide on the VPU path.
        loss = jnp.where(diff < beta, diff * diff * (0.5 / beta), diff - 0.5 * beta)
    else:
        loss = diff

    if need_mask:
        step = c * blocks_per_partial + j
        row0 = step * block_rows
        is_tail = row0 + block_rows > rows  # scalar: boundary or duplicate step

        @pl.when(jnp.logical_not(is_tail))
        def _():
            # Common path: full block, no mask work.
            acc_ref[...] += jnp.sum(loss, axis=0, keepdims=True)

        @pl.when(is_tail)
        def _():
            # Boundary block (or clamped duplicate step): zero rows past the
            # real extent.  (block_rows, 1) iota broadcasts against loss.
            row_idx = row0 + lax.broadcasted_iota(jnp.int32, (block_rows, 1), 0)
            masked = jnp.where(row_idx < rows, loss, 0.0)
            acc_ref[...] += jnp.sum(masked, axis=0, keepdims=True)
    else:
        acc_ref[...] += jnp.sum(loss, axis=0, keepdims=True)

    @pl.when(j == pl.num_programs(1) - 1)
    def _():
        o_ref[...] = acc_ref[...].reshape(1, 1, LANES)


def smooth_l1_loss(x_mask, y_mask, beta=1.0):
    assert x_mask.shape == y_mask.shape, (x_mask.shape, y_mask.shape)
    beta = float(beta)
    n_elems = x_mask.size

    xf = jnp.ravel(x_mask)
    yf = jnp.ravel(y_mask)

    rows = n_elems // LANES
    aligned = rows * LANES

    total = jnp.float32(0.0)

    if rows > 0:
        max_block_rows, partials_cap, use_core_parallel = _chip_config()

        # Lane-aligned prefix as a (rows, 128) slab.  When n_elems % 128 == 0
        # (the common case) the slice is a no-op and the reshape is free.
        x2 = xf[:aligned].reshape(rows, LANES)
        y2 = yf[:aligned].reshape(rows, LANES)

        block_rows = rows if rows <= max_block_rows else max_block_rows
        total_blocks = pl.cdiv(rows, block_rows)
        num_partials = min(partials_cap, total_blocks)
        blocks_per_partial = pl.cdiv(total_blocks, num_partials)
        covered_rows = num_partials * blocks_per_partial * block_rows
        need_mask = covered_rows != rows

        def in_map(c, j):
            # Clamp so over-covered steps re-read the last valid block; their
            # contribution is masked to zero inside the kernel.
            return (jnp.minimum(c * blocks_per_partial + j, total_blocks - 1), 0)

        kernel = functools.partial(
            _smooth_l1_kernel,
            beta=beta,
            rows=rows,
            block_rows=block_rows,
            blocks_per_partial=blocks_per_partial,
            need_mask=need_mask,
        )

        if use_core_parallel and num_partials > 1:
            # Real 2-TensorCore split (v7x): only CORE_PARALLEL shards across TCs.
            dim_sem = (pltpu.CORE_PARALLEL, pltpu.ARBITRARY)
        else:
            dim_sem = ("parallel", "arbitrary")

        partials = pl.pallas_call(
            kernel,
            out_shape=jax.ShapeDtypeStruct((num_partials, 1, LANES), jnp.float32),
            grid_spec=pltpu.PrefetchScalarGridSpec(
                num_scalar_prefetch=0,
                grid=(num_partials, blocks_per_partial),
                in_specs=[
                    pl.BlockSpec((block_rows, LANES), in_map),
                    pl.BlockSpec((block_rows, LANES), in_map),
                ],
                out_specs=pl.BlockSpec((1, 1, LANES), lambda c, j: (c, 0, 0)),
                scratch_shapes=[pltpu.VMEM((1, LANES), jnp.float32)],
            ),
            compiler_params=pltpu.CompilerParams(dimension_semantics=dim_sem),
            cost_estimate=pl.CostEstimate(
                flops=8 * rows * LANES,
                transcendentals=0,
                bytes_accessed=2 * rows * LANES * 4 + num_partials * LANES * 4,
            ),
        )(x2, y2)

        total = total + jnp.sum(partials)

    rem = n_elems - aligned
    if rem:
        # <128-element ragged tail: computed in plain JAX instead of padding
        # (or copying) the full arrays.
        total = total + jnp.sum(_elementwise_loss(xf[aligned:], yf[aligned:], beta))

    return total / jnp.float32(n_elems)


class SmoothL1Loss:
    """JAX/Pallas equivalent of the PyTorch SmoothL1Loss module."""

    def __init__(self, beta=1.0):
        self.beta = beta

    def __call__(self, x, y):
        return smooth_l1_loss(x["mask"], y["mask"], beta=self.beta)


def _reference(x_mask, y_mask, beta):
    diff = jnp.abs(x_mask - y_mask)
    if beta > 0:
        loss = jnp.where(diff < beta, 0.5 * diff ** 2 / beta, diff - 0.5 * beta)
    else:
        loss = diff
    return jnp.mean(loss)


if __name__ == "__main__":
    key = jax.random.PRNGKey(0)
    k1, k2, k3, k4 = jax.random.split(key, 4)

    # Small NCHW-style mask shapes, as implied by the module's forward.
    shape = (2, 4, 16, 16)
    x_mask = jax.random.normal(k1, shape, dtype=jnp.float32)
    y_mask = jax.random.normal(k2, shape, dtype=jnp.float32)

    module = SmoothL1Loss(beta=1.0)
    out = module({"mask": x_mask}, {"mask": y_mask})
    out = jax.block_until_ready(out)

    ref = _reference(x_mask, y_mask, beta=1.0)
    assert jnp.allclose(out, ref, rtol=1e-5, atol=1e-6), (out, ref)

    # Larger, awkwardly-sized case: exercises the multi-block grid, the gated
    # boundary-block mask, and the <128-element JAX-side tail path.
    shape_big = (3, 7, 517, 97)   # 1,053,129 elements (not a multiple of 128)
    xb = jax.random.normal(k3, shape_big, dtype=jnp.float32)
    yb = jax.random.normal(k4, shape_big, dtype=jnp.float32)
    out_b = jax.block_until_ready(module({"mask": xb}, {"mask": yb}))
    ref_b = _reference(xb, yb, beta=1.0)
    assert jnp.allclose(out_b, ref_b, rtol=2e-5, atol=1e-5), (out_b, ref_b)

    print("KERNEL_OK")
</pallas_src>

<mosaic_0001>
module attributes {stable_mosaic.version = 11 : i64} {
  func.func @_smooth_l1_kernel(%arg0: i32, %arg1: i32, %arg2: memref<16x128xf32, #tpu.memory_space<vmem>>, %arg3: memref<16x128xf32, #tpu.memory_space<vmem>>, %arg4: memref<1x1x128xf32, #tpu.memory_space<vmem>>, %arg5: memref<1x128xf32, #tpu.memory_space<vmem>>) attributes {dimension_semantics = [#tpu.dimension_semantics<parallel>, #tpu.dimension_semantics<arbitrary>], iteration_bounds = array<i64: 1, 1>, scalar_prefetch = 0 : i64, scratch_operands = 1 : i64, tpu.core_type = #tpu.core_type<tc>, window_params = [{transform_indices = @transform_0, window_bounds = array<i64: 16, 128>}, {transform_indices = @transform_1, window_bounds = array<i64: 16, 128>}, {transform_indices = @transform_2, window_bounds = array<i64: 1, 1, 128>}]} {
    %c0_i32 = arith.constant 0 : i32
    %0 = arith.cmpi eq, %arg1, %c0_i32 : i32
    %1 = arith.extui %0 : i1 to i32
    %c0_i32_0 = arith.constant 0 : i32
    %2 = arith.cmpi ne, %1, %c0_i32_0 : i32
    scf.if %2 {
      %cst_13 = arith.constant 0.000000e+00 : f32
      %23 = vector.broadcast %cst_13 : f32 to vector<1x128xf32>
      %c0_14 = arith.constant 0 : index
      %c0_15 = arith.constant 0 : index
      %24 = vector.load %arg5[%c0_14, %c0_15] : memref<1x128xf32, #tpu.memory_space<vmem>>, vector<1x128xf32>
      tpu.vector_store %arg5[%c0_14, %c0_15], %23 {strides = array<i32>} : memref<1x128xf32, #tpu.memory_space<vmem>>, vector<1x128xf32>,
    } else {
    }
    %c0 = arith.constant 0 : index
    %c0_1 = arith.constant 0 : index
    %3 = vector.load %arg2[%c0, %c0_1] : memref<16x128xf32, #tpu.memory_space<vmem>>, vector<16x128xf32>
    %c0_2 = arith.constant 0 : index
    %c0_3 = arith.constant 0 : index
    %4 = vector.load %arg3[%c0_2, %c0_3] : memref<16x128xf32, #tpu.memory_space<vmem>>, vector<16x128xf32>
    %5 = arith.subf %3, %4 : vector<16x128xf32>
    %6 = math.absf %5 : vector<16x128xf32>
    %cst = arith.constant 1.000000e+00 : f32
    %7 = vector.broadcast %cst : f32 to vector<16x128xf32>
    %8 = arith.cmpf olt, %6, %7 : vector<16x128xf32>
    %9 = arith.mulf %6, %6 : vector<16x128xf32>
    %cst_4 = arith.constant 5.000000e-01 : f32
    %10 = vector.broadcast %cst_4 : f32 to vector<16x128xf32>
    %11 = arith.mulf %9, %10 : vector<16x128xf32>
    %cst_5 = arith.constant 5.000000e-01 : f32
    %12 = vector.broadcast %cst_5 : f32 to vector<16x128xf32>
    %13 = arith.subf %6, %12 : vector<16x128xf32>
    %14 = arith.select %8, %11, %13 : vector<16x128xi1>, vector<16x128xf32>
    %c0_6 = arith.constant 0 : index
    %c0_7 = arith.constant 0 : index
    %15 = vector.load %arg5[%c0_6, %c0_7] : memref<1x128xf32, #tpu.memory_space<vmem>>, vector<1x128xf32>
    %cst_8 = arith.constant dense<0.000000e+00> : vector<128xf32>
    %16 = vector.multi_reduction <add>, %14, %cst_8 [0] : vector<16x128xf32> to vector<128xf32>
    %17 = vector.shape_cast %16 : vector<128xf32> to vector<1x128xf32>
    %18 = arith.addf %15, %17 : vector<1x128xf32>
    %c0_9 = arith.constant 0 : index
    %c0_10 = arith.constant 0 : index
    %19 = vector.load %arg5[%c0_9, %c0_10] : memref<1x128xf32, #tpu.memory_space<vmem>>, vector<1x128xf32>
    tpu.vector_store %arg5[%c0_9, %c0_10], %18 {strides = array<i32>} : memref<1x128xf32, #tpu.memory_space<vmem>>, vector<1x128xf32>,
    %c0_i32_11 = arith.constant 0 : i32
    %20 = arith.cmpi eq, %arg1, %c0_i32_11 : i32
    %21 = arith.extui %20 : i1 to i32
    %c0_i32_12 = arith.constant 0 : i32
    %22 = arith.cmpi ne, %21, %c0_i32_12 : i32
    scf.if %22 {
      %c0_13 = arith.constant 0 : index
      %c0_14 = arith.constant 0 : index
      %23 = vector.load %arg5[%c0_13, %c0_14] : memref<1x128xf32, #tpu.memory_space<vmem>>, vector<1x128xf32>
      %24 = vector.shape_cast %23 : vector<1x128xf32> to vector<1x1x128xf32>
      %c0_15 = arith.constant 0 : index
      %c0_16 = arith.constant 0 : index
      %c0_17 = arith.constant 0 : index
      %25 = vector.load %arg4[%c0_15, %c0_16, %c0_17] : memref<1x1x128xf32, #tpu.memory_space<vmem>>, vector<1x1x128xf32>
      tpu.vector_store %arg4[%c0_15, %c0_16, %c0_17], %24 {strides = array<i32>} : memref<1x1x128xf32, #tpu.memory_space<vmem>>, vector<1x1x128xf32>,
    } else {
    }
    return
  }
  func.func @transform_0(%arg0: i32, %arg1: i32) -> (i32, i32) {
    %c1_i32 = arith.constant 1 : i32
    %0 = arith.muli %arg0, %c1_i32 : i32
    %1 = arith.addi %0, %arg1 : i32
    %c0_i32 = arith.constant 0 : i32
    %2 = arith.minsi %1, %c0_i32 : i32
    %c0_i32_0 = arith.constant 0 : i32
    %c0_i32_1 = arith.constant 0 : i32
    return %2, %c0_i32_0 : i32, i32
  }
  func.func @transform_1(%arg0: i32, %arg1: i32) -> (i32, i32) {
    %c1_i32 = arith.constant 1 : i32
    %0 = arith.muli %arg0, %c1_i32 : i32
    %1 = arith.addi %0, %arg1 : i32
    %c0_i32 = arith.constant 0 : i32
    %2 = arith.minsi %1, %c0_i32 : i32
    %c0_i32_0 = arith.constant 0 : i32
    %c0_i32_1 = arith.constant 0 : i32
    return %2, %c0_i32_0 : i32, i32
  }
  func.func @transform_2(%arg0: i32, %arg1: i32) -> (i32, i32, i32) {
    %c0_i32 = arith.constant 0 : i32
    %c0_i32_0 = arith.constant 0 : i32
    %c0_i32_1 = arith.constant 0 : i32
    return %arg0, %c0_i32, %c0_i32_0 : i32, i32, i32
  }
}

</mosaic_0001>

<llo_original>
// kernel: tpu_custom_call.1
$region0: #{tpu_custom_call.1}
  #allocation0 [shape = 'u32[]', space=smem, size = 0x4, offset = 0x4, fixed_abs, tag = 'smem constant byte address 0x4 - core index']
  #allocation1 [shape = 'u32[144,128]{1,0:T(1,128)}', space=vmem, size = 0x12000, scoped, tag = 'internal scratch']
  #allocation2 [shape = 'f32[1,128]{1,0:T(1,128)}', space=vmem, size = 0x200, scoped, tag = 'scratch operand']
  %s0 = inlined_call_operand.hbm [shape: f32[16,128], index: 0, kind: input, shape index: {}]
  %s1 = inlined_call_operand.hbm [shape: f32[16,128], index: 1, kind: input, shape index: {}]
  %s2 = inlined_call_operand.hbm [shape: f32[1,1,128], index: 2, kind: output, shape index: {}]
  %s3 = sld [smem:[#allocation0]]
  $region34: #{tpu_custom_call.1} parent=0
    _
  %s5 = ssub.s32 1, %s3
  %s6 = scalar_select 0, %s5, %s3
  $region1: #{tpu_custom_call.1} parent=0
    #allocation3 [shape = 'u8[8192]{0}', space=vmem, size = 0x2000, scoped, tag = 'input window, operand 0, single buffered']
    #allocation4 [shape = 's32[1]{0}', space=sflag, size = 0x4, scoped, tag = 'scoped memory for tpu_custom_call.1']
    #allocation5 [shape = 's32[1]{0}', space=sflag, size = 0x4, scoped, tag = 'scoped memory for tpu_custom_call.1']
    #allocation6 [shape = 'u8[8192]{0}', space=vmem, size = 0x2000, scoped, tag = 'input window, operand 1, single buffered']
    #allocation7 [shape = 's32[1]{0}', space=sflag, size = 0x4, scoped, tag = 'scoped memory for tpu_custom_call.1']
    #allocation8 [shape = 'u8[512]{0}', space=vmem, size = 0x400, scoped, tag = 'output window, operand 0, single buffered']
    %7 = vsyncpa [#allocation4], 0
    %8 = vsyncpa [#allocation7], 0
    %9 = vsyncpa [#allocation5], 0
    // Predicated region
    $region2: #{tpu_custom_call.1} parent=1 // pred_check
      _
    $region3: #{tpu_custom_call.1} parent=1 // pred_check_branch
      %11 = sbr.rel (0) target = $region5
    $region4: #{tpu_custom_call.1} parent=1 // pred_region
      %s12 = sadd.s32 0, 0
      %p13 = scmp.lt.s32.totalorder %s12, 0
      %s14 = scalar_select %p13, %s12, 0
      %s15 = smul.u32 2, %s14
      %s17 = ssub.s32 256, 256
      %18 = vsyncadd [#allocation4], %s17
      %s19 = smul.addr %s15, 128
      %s20 = scalar_lea.hbm %s0, %s19
      %s21 = sshll.u32 [#allocation3], 4
      %s22 = int_to_ptr.vmem [resolvable:$true] %s21
      %27 = dma.hbm_to_vmem [thread:$0]  %s20, 256, %s22, [#allocation4], 128, 128, 8
    $region5: #{tpu_custom_call.1} parent=1 // pred_fallthru
      _
    // Predicated region
    $region6: #{tpu_custom_call.1} parent=1 // pred_check
      _
    $region7: #{tpu_custom_call.1} parent=1 // pred_check_branch
      %29 = sbr.rel (0) target = $region9
    $region8: #{tpu_custom_call.1} parent=1 // pred_region
      %s30 = sadd.s32 0, 0
      %p31 = scmp.lt.s32.totalorder %s30, 0
      %s32 = scalar_select %p31, %s30, 0
      %s33 = smul.u32 2, %s32
      %s35 = ssub.s32 256, 256
      %36 = vsyncadd [#allocation7], %s35
      %s37 = smul.addr %s33, 128
      %s38 = scalar_lea.hbm %s1, %s37
      %s39 = sshll.u32 [#allocation6], 4
      %s40 = int_to_ptr.vmem [resolvable:$true] %s39
      %45 = dma.hbm_to_vmem [thread:$0]  %s38, 256, %s40, [#allocation7], 128, 128, 8
    $region9: #{tpu_custom_call.1} parent=1 // pred_fallthru
      _
    // Predicated region
    $region10: #{tpu_custom_call.1} parent=1 // pred_check
      _
    $region11: #{tpu_custom_call.1} parent=1 // pred_check_branch
      %47 = sbr.rel (0) target = $region13
    $region12: #{tpu_custom_call.1} parent=1 // pred_region
      %48 = dma.done [#allocation4], 256
    $region13: #{tpu_custom_call.1} parent=1 // pred_fallthru
      _
    // Predicated region
    $region14: #{tpu_custom_call.1} parent=1 // pred_check
      _
    $region15: #{tpu_custom_call.1} parent=1 // pred_check_branch
      %50 = sbr.rel (0) target = $region17
    $region16: #{tpu_custom_call.1} parent=1 // pred_region
      %51 = dma.done [#allocation7], 256
    $region17: #{tpu_custom_call.1} parent=1 // pred_fallthru
      _
    %s52 = sadd.s32 0, 0
    %p53 = scmp.lt.s32.totalorder %s52, 0
    %s54 = scalar_select %p53, %s52, 0
    %s55 = smul.u32 2, %s54
    %s56 = sadd.s32 0, 0
    %p57 = scmp.lt.s32.totalorder %s56, 0
    %s58 = scalar_select %p57, %s56, 0
    %s59 = smul.u32 2, %s58
    %p60 = scmp.eq.s32.totalorder 0, 0
    // Predicated region
    $region18: #{tpu_custom_call.1} parent=1 // pred_check
      %p61 = pneg %p60
    $region19: #{tpu_custom_call.1} parent=1 // pred_check_branch
      %63 = sbr.rel (%p61) target = $region21
    $region20: #{tpu_custom_call.1} parent=1 // pred_region
      %64 = vst [vmem:[#allocation2] sm:$0x1] 0.0
    $region21: #{tpu_custom_call.1} parent=1 // pred_fallthru
      _
    %v65 = vld [vmem:[#allocation3] sm:$0xff]
    %v66 = vld [vmem:[#allocation3 + $0x8] sm:$0xff]
    %v67 = vld [vmem:[#allocation6] sm:$0xff]
    %v68 = vld [vmem:[#allocation6 + $0x8] sm:$0xff]
    %v69 = vsub.f32 %v65, %v67
    %v70 = vsub.f32 %v66, %v68
    %v71 = vand.u32 2147483647, %v69
    %v72 = vand.u32 2147483647, %v70
    %vm73 = vcmp.lt.f32.partialorder %v71, 1.0
    %vm74 = vcmp.lt.f32.partialorder %v72, 1.0
    %v75 = vmul.f32 %v71, %v71
    %v76 = vmul.f32 %v72, %v72
    %v77 = vmul.f32 %v75, 0.5
    %v78 = vmul.f32 %v76, 0.5
    %v79 = vsub.f32 %v71, 0.5
    %v80 = vsub.f32 %v72, 0.5
    %v81 = vsel %vm73, %v77, %v79
    %v82 = vsel %vm74, %v78, %v80
    %v83 = vld [vmem:[#allocation2] sm:$0x1]
    %v84 = vadd.f32 %v81, %v82
    %v85 = vrot.slane %v84, 4
    %v86 = vadd.f32 %v84, %v85
    %v87 = vrot.slane %v86, 2
    %v88 = vadd.f32 %v86, %v87
    %v89 = vrot.slane %v88, 1
    %v90 = vadd.f32 %v88, %v89
    %v91 = vadd.f32 %v83, %v90
    %92 = vst [vmem:[#allocation2] sm:$0x1] %v91
    // Predicated region
    $region22: #{tpu_custom_call.1} parent=1 // pred_check
      %p93 = pneg %p60
    $region23: #{tpu_custom_call.1} parent=1 // pred_check_branch
      %95 = sbr.rel (%p93) target = $region25
    $region24: #{tpu_custom_call.1} parent=1 // pred_region
      %v96 = vld [vmem:[#allocation2] sm:$0x1]
      %97 = vst [vmem:[#allocation8] sm:$0x1] %v96
    $region25: #{tpu_custom_call.1} parent=1 // pred_fallthru
      _
    // Predicated region
    $region26: #{tpu_custom_call.1} parent=1 // pred_check
      _
    $region27: #{tpu_custom_call.1} parent=1 // pred_check_branch
      %99 = sbr.rel (0) target = $region29
    $region28: #{tpu_custom_call.1} parent=1 // pred_region
      %s101 = ssub.s32 16, 16
      %102 = vsyncadd [#allocation5], %s101
      %s104 = sshll.u32 [#allocation8], 4
      %s105 = int_to_ptr.vmem [resolvable:$true] %s104
      %107 = dma.vmem_to_hbm [thread:$0]  %s105, 16, %s2, [#allocation5]
    $region29: #{tpu_custom_call.1} parent=1 // pred_fallthru
      _
    // Predicated region
    $region30: #{tpu_custom_call.1} parent=1 // pred_check
      _
    $region31: #{tpu_custom_call.1} parent=1 // pred_check_branch
      %109 = sbr.rel (0) target = $region33
    $region32: #{tpu_custom_call.1} parent=1 // pred_region
      %110 = dma.done [#allocation5], 16
    $region33: #{tpu_custom_call.1} parent=1 // pred_fallthru
      _
    %111 = vsyncpa [#allocation4], 1
    %112 = vsyncpa [#allocation7], 1
    %113 = vsyncpa [#allocation5], 1

</llo_original>
